<compile_context>
chip_gen: v7x
topology: tpu7x:2x2x1
jax: 0.10.0
libtpu: 0.0.40
codegen_flags: <defaults>
</compile_context>

<pallas_src>
import functools
import math

import jax
import jax.numpy as jnp
from jax.experimental import pallas as pl
from jax.experimental.pallas import tpu as pltpu


def _round_up(x: int, m: int) -> int:
    return (x + m - 1) // m * m


_ACTIVATIONS = {
    "relu": lambda v: jnp.maximum(v, 0.0),
    "tanh": jnp.tanh,
    "sigmoid": jax.nn.sigmoid,
    "gelu": jax.nn.gelu,
    "elu": jax.nn.elu,
}


def _gistnet_head_kernel(xp_ref, w1_ref, b1_ref, w2_ref, b2_ref,
                         outp_ref, x1p_ref, *, act, compute_dtype):
    # x block: (TR, D*P) float32, lane-dense (D*P == 128 for this config).
    x = xp_ref[...]
    xb = x.astype(compute_dtype)                 # single cast feeding the MXU
    # fc1 as a block-diagonal matmul over the P packed rows; f32 accumulation.
    h = jnp.dot(xb, w1_ref[...], preferred_element_type=jnp.float32)
    h = act(h + b1_ref[...])                     # f32 epilogue (v5e: no bf16 VPU)
    x1p_ref[...] = h.astype(x1p_ref.dtype)       # lane-dense f32 store
    hb = h.astype(compute_dtype)                 # single bf16 cast, reused below
    # dropout: eval / inference -> identity.
    y = jnp.dot(hb, w2_ref[...], preferred_element_type=jnp.float32)
    outp_ref[...] = (y + b2_ref[...]).astype(outp_ref.dtype)


def gistnet_head(x, w1, b1, w2, b2, *, tb=32768, compute_dtype=jnp.bfloat16,
                 activation="relu", vmem_budget_bytes=40 * 1024 * 1024):
    """Fused fc1 -> activation -> (dropout=id) -> fc2.

    x:  (B, D) float32 activations (consumed as-is, no wrapper layout passes).
    w1: (W, D), b1: (W,), w2: (O, W), b2: (O,)   -- PyTorch nn.Linear layout.
    Returns (logits (B, O) float32, x1 (B, W) float32).
    """
    B, D = x.shape
    W = w1.shape[0]
    O = w2.shape[0]
    act = _ACTIVATIONS[activation]
    cdt = jnp.dtype(compute_dtype)

    # Pack P original rows per kernel row so the packed feature dim fills a
    # full 128-lane vreg.  The (B, D) <-> (B/P, D*P) reshapes are free
    # row-major bitcasts (no extra HBM pass).
    P = 128 // D if (D <= 128 and 128 % D == 0) else 1
    step = 8 * P                                  # sublane alignment in rows

    def lane_pad(n):                              # VMEM lane padding to 128
        return _round_up(n, 128)

    # VMEM bytes per packed row: double-buffered x / x1 / logits blocks (f32),
    # the f32 h intermediate, and the low-precision copies feeding the MXU.
    per_packed_row = (2 * lane_pad(D * P) * 4 + 2 * lane_pad(W * P) * 4
                      + 2 * lane_pad(O * P) * 4 + lane_pad(W * P) * 4
                      + lane_pad(D * P) * cdt.itemsize
                      + lane_pad(W * P) * cdt.itemsize)

    # Tile sizing: multiple of 8*P, never (much) larger than the batch, and
    # bounded by a VMEM budget chosen for v7x's 64 MiB physical VMEM.
    tb = _round_up(max(step, tb), step)
    tb = min(tb, _round_up(B, step))              # pad waste < one sub-tile
    tr_budget = max(8, (vmem_budget_bytes // per_packed_row) // 8 * 8)
    tb = min(tb, tr_budget * P)
    Bp = _round_up(B, tb)
    TR = tb // P
    grid = (Bp // tb,)

    if Bp != B:
        # One extra HBM pass only when B is not tile-aligned; keep production
        # batches a multiple of tb (or of 8*P) to avoid it.
        x = jnp.pad(x, ((0, Bp - B), (0, 0)))
    xp = x.reshape(Bp // P, D * P)                # free bitcast

    # Pre-packed, VMEM-resident weights: block-diagonal so the packed matmul
    # applies fc1 / fc2 independently to each of the P rows in a packed row.
    eye = jnp.eye(P, dtype=jnp.float32)
    w1p = jnp.kron(eye, w1.T.astype(jnp.float32)).astype(compute_dtype)  # (D*P, W*P)
    w2p = jnp.kron(eye, w2.T.astype(jnp.float32)).astype(compute_dtype)  # (W*P, O*P)
    b1p = jnp.tile(b1.astype(jnp.float32), P).reshape(1, W * P)
    b2p = jnp.tile(b2.astype(jnp.float32), P).reshape(1, O * P)

    weight_bytes = (w1p.size + w2p.size) * cdt.itemsize + (W + O) * P * 4
    vmem_limit = int(per_packed_row * TR + weight_bytes + 4 * 1024 * 1024)
    vmem_limit = max(16 * 1024 * 1024, min(vmem_limit, 60 * 1024 * 1024))

    cost = pl.CostEstimate(
        flops=2 * Bp * (D * W + W * O),
        transcendentals=0,
        bytes_accessed=(Bp * D * 4 + Bp * W * 4 + Bp * O * 4 + weight_bytes),
    )

    kernel = functools.partial(_gistnet_head_kernel, act=act,
                               compute_dtype=compute_dtype)

    outp, x1p = pl.pallas_call(
        kernel,
        out_shape=(jax.ShapeDtypeStruct((Bp // P, O * P), jnp.float32),
                   jax.ShapeDtypeStruct((Bp // P, W * P), jnp.float32)),
        grid=grid,
        in_specs=[
            pl.BlockSpec((TR, D * P), lambda i: (i, 0)),      # x tile (pipelined)
            pl.BlockSpec((D * P, W * P), lambda i: (0, 0)),   # W1 (VMEM-resident)
            pl.BlockSpec((1, W * P), lambda i: (0, 0)),       # b1
            pl.BlockSpec((W * P, O * P), lambda i: (0, 0)),   # W2
            pl.BlockSpec((1, O * P), lambda i: (0, 0)),       # b2
        ],
        out_specs=(
            pl.BlockSpec((TR, O * P), lambda i: (i, 0)),      # packed logits
            pl.BlockSpec((TR, W * P), lambda i: (i, 0)),      # packed x1 (lane-dense)
        ),
        compiler_params=pltpu.CompilerParams(
            dimension_semantics=("parallel",),   # v7x: 2 TCs split batch tiles
            vmem_limit_bytes=vmem_limit,
        ),
        cost_estimate=cost,
    )(xp, w1p, b1p, w2p, b2p)

    # Free row-major bitcasts back to the PyTorch (B, features) convention.
    logits = outp.reshape(Bp, O)
    x1 = x1p.reshape(Bp, W)
    if Bp != B:
        logits = logits[:B]
        x1 = x1[:B]
    return logits, x1


def init_params(key, d_in, d_hidden, d_out):
    """Deterministic PyTorch-style Linear init (uniform +/- 1/sqrt(fan_in))."""
    k1, k2, k3, k4 = jax.random.split(key, 4)
    lim1 = 1.0 / math.sqrt(d_in)
    lim2 = 1.0 / math.sqrt(d_hidden)
    w1 = jax.random.uniform(k1, (d_hidden, d_in), jnp.float32, -lim1, lim1)
    b1 = jax.random.uniform(k2, (d_hidden,), jnp.float32, -lim1, lim1)
    w2 = jax.random.uniform(k3, (d_out, d_hidden), jnp.float32, -lim2, lim2)
    b2 = jax.random.uniform(k4, (d_out,), jnp.float32, -lim2, lim2)
    return w1, b1, w2, b2


def reference(x, w1, b1, w2, b2):
    """Pure-f32 JAX reference matching the PyTorch head (eval mode)."""
    x1 = jnp.maximum(x @ w1.T + b1[None, :], 0.0)
    y = x1 @ w2.T + b2[None, :]
    return y, x1


if __name__ == "__main__":
    key = jax.random.PRNGKey(0)
    kx, kp = jax.random.split(key)

    batch = 200       # not tile-aligned: exercises the pad + clamp path
    d_in = 32         # lastgd^3 * conv_res * m4 = 1*1*1*32*1
    d_hidden = 32     # args.conv_res
    d_out = 6

    x = jax.random.normal(kx, (batch, d_in), jnp.float32)
    w1, b1, w2, b2 = init_params(kp, d_in, d_hidden, d_out)

    # Default large-tile path (tb clamps to the tiny batch -> grid=(1,)).
    logits, x1 = gistnet_head(x, w1, b1, w2, b2)
    # Multi-tile path (grid=(4,)): exercises pipelining / megacore sharding.
    logits_mt, x1_mt = gistnet_head(x, w1, b1, w2, b2, tb=64)
    # Full-f32 compute path (bit-closer match to the f32 PyTorch model).
    logits_f32, x1_f32 = gistnet_head(x, w1, b1, w2, b2,
                                      compute_dtype=jnp.float32)
    jax.block_until_ready((logits, x1, logits_mt, x1_mt, logits_f32, x1_f32))

    ref_logits, ref_x1 = reference(x, w1, b1, w2, b2)
    assert logits.shape == (batch, d_out) and x1.shape == (batch, d_hidden)
    # bf16 MXU operands with f32 accumulation: ~0.5% relative error budget.
    assert jnp.allclose(logits, ref_logits, atol=3e-2, rtol=3e-2)
    assert jnp.allclose(x1, ref_x1, atol=3e-2, rtol=3e-2)
    assert jnp.allclose(logits_mt, ref_logits, atol=3e-2, rtol=3e-2)
    assert jnp.allclose(x1_mt, ref_x1, atol=3e-2, rtol=3e-2)
    # f32 compute path should match the f32 reference tightly.
    assert jnp.allclose(logits_f32, ref_logits, atol=1e-4, rtol=1e-4)
    assert jnp.allclose(x1_f32, ref_x1, atol=1e-4, rtol=1e-4)

    print("KERNEL_OK")
</pallas_src>

<mosaic_0001>
module attributes {stable_mosaic.version = 11 : i64} {
  func.func @_gistnet_head_kernel(%arg0: i32, %arg1: memref<56x128xf32, #tpu.memory_space<vmem>>, %arg2: memref<128x128xbf16, #tpu.memory_space<vmem>>, %arg3: memref<1x128xf32, #tpu.memory_space<vmem>>, %arg4: memref<128x24xbf16, #tpu.memory_space<vmem>>, %arg5: memref<1x24xf32, #tpu.memory_space<vmem>>, %arg6: memref<56x24xf32, #tpu.memory_space<vmem>>, %arg7: memref<56x128xf32, #tpu.memory_space<vmem>>) attributes {dimension_semantics = [#tpu.dimension_semantics<parallel>], iteration_bounds = array<i64: 1>, scalar_prefetch = 0 : i64, scratch_operands = 0 : i64, tpu.core_type = #tpu.core_type<tc>, window_params = [{transform_indices = @transform_0, window_bounds = array<i64: 56, 128>}, {pipeline_mode = #tpu.pipeline_mode<synchronous>, transform_indices = @transform_1, window_bounds = array<i64: 128, 128>}, {pipeline_mode = #tpu.pipeline_mode<synchronous>, transform_indices = @transform_2, window_bounds = array<i64: 1, 128>}, {pipeline_mode = #tpu.pipeline_mode<synchronous>, transform_indices = @transform_3, window_bounds = array<i64: 128, 24>}, {pipeline_mode = #tpu.pipeline_mode<synchronous>, transform_indices = @transform_4, window_bounds = array<i64: 1, 24>}, {transform_indices = @transform_5, window_bounds = array<i64: 56, 24>}, {transform_indices = @transform_6, window_bounds = array<i64: 56, 128>}]} {
    %c0 = arith.constant 0 : index
    %c0_0 = arith.constant 0 : index
    %0 = vector.load %arg1[%c0, %c0_0] : memref<56x128xf32, #tpu.memory_space<vmem>>, vector<56x128xf32>
    %1 = arith.truncf %0 : vector<56x128xf32> to vector<56x128xbf16>
    %c0_1 = arith.constant 0 : index
    %c0_2 = arith.constant 0 : index
    %2 = vector.load %arg2[%c0_1, %c0_2] : memref<128x128xbf16, #tpu.memory_space<vmem>>, vector<128x128xbf16>
    %cst = arith.constant dense<0.000000e+00> : vector<56x128xf32>
    %3 = tpu.matmul %1, %2, %cst {dimension_numbers = #tpu.dot_dimension_numbers<[1], [0], [0], [1], [0, 0, 1, 1], [], []>} : vector<56x128xbf16>, vector<128x128xbf16>, vector<56x128xf32> -> vector<56x128xf32>
    %c0_3 = arith.constant 0 : index
    %c0_4 = arith.constant 0 : index
    %4 = vector.load %arg3[%c0_3, %c0_4] : memref<1x128xf32, #tpu.memory_space<vmem>>, vector<1x128xf32>
    %5 = vector.broadcast %4 : vector<1x128xf32> to vector<56x128xf32>
    %6 = arith.addf %3, %5 : vector<56x128xf32>
    %cst_5 = arith.constant 0.000000e+00 : f32
    %7 = vector.broadcast %cst_5 : f32 to vector<56x128xf32>
    %8 = arith.maximumf %6, %7 : vector<56x128xf32>
    %c0_6 = arith.constant 0 : index
    %c0_7 = arith.constant 0 : index
    %9 = vector.load %arg7[%c0_6, %c0_7] : memref<56x128xf32, #tpu.memory_space<vmem>>, vector<56x128xf32>
    tpu.vector_store %arg7[%c0_6, %c0_7], %8 {strides = array<i32>} : memref<56x128xf32, #tpu.memory_space<vmem>>, vector<56x128xf32>,
    %10 = arith.truncf %8 : vector<56x128xf32> to vector<56x128xbf16>
    %c0_8 = arith.constant 0 : index
    %c0_9 = arith.constant 0 : index
    %11 = vector.load %arg4[%c0_8, %c0_9] : memref<128x24xbf16, #tpu.memory_space<vmem>>, vector<128x24xbf16>
    %cst_10 = arith.constant dense<0.000000e+00> : vector<56x24xf32>
    %12 = tpu.matmul %10, %11, %cst_10 {dimension_numbers = #tpu.dot_dimension_numbers<[1], [0], [0], [1], [0, 0, 1, 1], [], []>} : vector<56x128xbf16>, vector<128x24xbf16>, vector<56x24xf32> -> vector<56x24xf32>
    %c0_11 = arith.constant 0 : index
    %c0_12 = arith.constant 0 : index
    %13 = vector.load %arg5[%c0_11, %c0_12] : memref<1x24xf32, #tpu.memory_space<vmem>>, vector<1x24xf32>
    %14 = vector.broadcast %13 : vector<1x24xf32> to vector<56x24xf32>
    %15 = arith.addf %12, %14 : vector<56x24xf32>
    %c0_13 = arith.constant 0 : index
    %c0_14 = arith.constant 0 : index
    %16 = vector.load %arg6[%c0_13, %c0_14] : memref<56x24xf32, #tpu.memory_space<vmem>>, vector<56x24xf32>
    tpu.vector_store %arg6[%c0_13, %c0_14], %15 {strides = array<i32>} : memref<56x24xf32, #tpu.memory_space<vmem>>, vector<56x24xf32>,
    return
  }
  func.func @transform_0(%arg0: i32) -> (i32, i32) {
    %c0_i32 = arith.constant 0 : i32
    %c0_i32_0 = arith.constant 0 : i32
    return %arg0, %c0_i32 : i32, i32
  }
  func.func @transform_1(%arg0: i32) -> (i32, i32) {
    %c0_i32 = arith.constant 0 : i32
    %c0_i32_0 = arith.constant 0 : i32
    %c0_i32_1 = arith.constant 0 : i32
    return %c0_i32, %c0_i32_0 : i32, i32
  }
  func.func @transform_2(%arg0: i32) -> (i32, i32) {
    %c0_i32 = arith.constant 0 : i32
    %c0_i32_0 = arith.constant 0 : i32
    %c0_i32_1 = arith.constant 0 : i32
    return %c0_i32, %c0_i32_0 : i32, i32
  }
  func.func @transform_3(%arg0: i32) -> (i32, i32) {
    %c0_i32 = arith.constant 0 : i32
    %c0_i32_0 = arith.constant 0 : i32
    %c0_i32_1 = arith.constant 0 : i32
    return %c0_i32, %c0_i32_0 : i32, i32
  }
  func.func @transform_4(%arg0: i32) -> (i32, i32) {
    %c0_i32 = arith.constant 0 : i32
    %c0_i32_0 = arith.constant 0 : i32
    %c0_i32_1 = arith.constant 0 : i32
    return %c0_i32, %c0_i32_0 : i32, i32
  }
  func.func @transform_5(%arg0: i32) -> (i32, i32) {
    %c0_i32 = arith.constant 0 : i32
    %c0_i32_0 = arith.constant 0 : i32
    return %arg0, %c0_i32 : i32, i32
  }
  func.func @transform_6(%arg0: i32) -> (i32, i32) {
    %c0_i32 = arith.constant 0 : i32
    %c0_i32_0 = arith.constant 0 : i32
    return %arg0, %c0_i32 : i32, i32
  }
}

</mosaic_0001>

<llo_original>
// kernel: tpu_custom_call.1
$region0: #{tpu_custom_call.1}
  #allocation0 [shape = 'u32[]', space=smem, size = 0x4, offset = 0x4, fixed_abs, tag = 'smem constant byte address 0x4 - core index']
  #allocation1 [shape = 'u32[144,128]{1,0:T(1,128)}', space=vmem, size = 0x12000, scoped, tag = 'internal scratch']
  %s0 = inlined_call_operand.hbm [shape: f32[56,128], index: 0, kind: input, shape index: {}]
  %s1 = inlined_call_operand.vmem [shape: bf16[128,128], index: 1, kind: input, shape index: {}]
  %s2 = inlined_call_operand.vmem [shape: f32[1,128], index: 2, kind: input, shape index: {}]
  %s3 = inlined_call_operand.vmem [shape: bf16[128,24], index: 3, kind: input, shape index: {}]
  %s4 = inlined_call_operand.vmem [shape: f32[1,24], index: 4, kind: input, shape index: {}]
  %s5 = inlined_call_operand.vmem [shape: f32[56,24], index: 5, kind: output, shape index: {0}]
  %s6 = inlined_call_operand.hbm [shape: f32[56,128], index: 6, kind: output, shape index: {1}]
  %7 = xla_tuple %s5, %s6
  %s8 = sld [smem:[#allocation0]]
  $region42: #{tpu_custom_call.1} parent=0
    _
  %s10 = ssub.s32 1, %s8
  %s11 = scalar_select 0, %s10, %s8
  $region1: #{tpu_custom_call.1} parent=0
    #allocation2 [shape = 'u8[28672]{0}', space=vmem, size = 0x7000, scoped, tag = 'input window, operand 0, single buffered']
    #allocation3 [shape = 's32[1]{0}', space=sflag, size = 0x4, scoped, tag = 'scoped memory for tpu_custom_call.1']
    #allocation4 [shape = 's32[1]{0}', space=sflag, size = 0x4, scoped, tag = 'scoped memory for tpu_custom_call.1']
    #allocation5 [shape = 'u8[28672]{0}', space=vmem, size = 0x7000, scoped, tag = 'output window, operand 1, single buffered']
    %12 = vsyncpa [#allocation3], 0
    %13 = vsyncpa [#allocation4], 0
    // Predicated region
    $region2: #{tpu_custom_call.1} parent=1 // pred_check
      _
    $region3: #{tpu_custom_call.1} parent=1 // pred_check_branch
      %15 = sbr.rel (0) target = $region5
    $region4: #{tpu_custom_call.1} parent=1 // pred_region
      %s17 = ssub.s32 896, 896
      %18 = vsyncadd [#allocation3], %s17
      %s19 = sshll.u32 [#allocation2], 4
      %s20 = int_to_ptr.vmem [resolvable:$true] %s19
      %25 = dma.hbm_to_vmem [thread:$0]  %s0, 896, %s20, [#allocation3], 128, 128, 8
    $region5: #{tpu_custom_call.1} parent=1 // pred_fallthru
      _
    // Predicated region
    $region6: #{tpu_custom_call.1} parent=1 // pred_check
      _
    $region7: #{tpu_custom_call.1} parent=1 // pred_check_branch
      %27 = sbr.rel (0) target = $region9
    $region8: #{tpu_custom_call.1} parent=1 // pred_region
      _
    $region9: #{tpu_custom_call.1} parent=1 // pred_fallthru
      _
    // Predicated region
    $region10: #{tpu_custom_call.1} parent=1 // pred_check
      _
    $region11: #{tpu_custom_call.1} parent=1 // pred_check_branch
      %29 = sbr.rel (0) target = $region13
    $region12: #{tpu_custom_call.1} parent=1 // pred_region
      _
    $region13: #{tpu_custom_call.1} parent=1 // pred_fallthru
      _
    // Predicated region
    $region14: #{tpu_custom_call.1} parent=1 // pred_check
      _
    $region15: #{tpu_custom_call.1} parent=1 // pred_check_branch
      %31 = sbr.rel (0) target = $region17
    $region16: #{tpu_custom_call.1} parent=1 // pred_region
      _
    $region17: #{tpu_custom_call.1} parent=1 // pred_fallthru
      _
    // Predicated region
    $region18: #{tpu_custom_call.1} parent=1 // pred_check
      _
    $region19: #{tpu_custom_call.1} parent=1 // pred_check_branch
      %33 = sbr.rel (0) target = $region21
    $region20: #{tpu_custom_call.1} parent=1 // pred_region
      _
    $region21: #{tpu_custom_call.1} parent=1 // pred_fallthru
      _
    // Predicated region
    $region22: #{tpu_custom_call.1} parent=1 // pred_check
      _
    $region23: #{tpu_custom_call.1} parent=1 // pred_check_branch
      %35 = sbr.rel (0) target = $region25
    $region24: #{tpu_custom_call.1} parent=1 // pred_region
      %36 = dma.done [#allocation3], 896
    $region25: #{tpu_custom_call.1} parent=1 // pred_fallthru
      _
    %v38 = vld [vmem:[#allocation2] sm:$0xff]
    %v39 = vld [vmem:[#allocation2 + $0x8] sm:$0xff]
    %v40 = vld [vmem:[#allocation2 + $0x10] sm:$0xff]
    %v41 = vld [vmem:[#allocation2 + $0x18] sm:$0xff]
    %v42 = vld [vmem:[#allocation2 + $0x20] sm:$0xff]
    %v43 = vld [vmem:[#allocation2 + $0x28] sm:$0xff]
    %v44 = vld [vmem:[#allocation2 + $0x30] sm:$0xff]
    %v45 = vpack.c.bf16 %v39, %v38
    %v46 = vpack.c.bf16 %v41, %v40
    %v47 = vpack.c.bf16 %v43, %v42
    %v48 = vpack.c.bf16 %v44, %v44
    %v49 = vld [vmem:[%s1] sm:$0xf]
    %v50 = vld [vmem:[%s1 + $0x4] sm:$0xf]
    %v51 = vld [vmem:[%s1 + $0x8] sm:$0xf]
    %v52 = vld [vmem:[%s1 + $0xc] sm:$0xf]
    %v53 = vld [vmem:[%s1 + $0x10] sm:$0xf]
    %v54 = vld [vmem:[%s1 + $0x14] sm:$0xf]
    %v55 = vld [vmem:[%s1 + $0x18] sm:$0xf]
    %v56 = vld [vmem:[%s1 + $0x1c] sm:$0xf]
    %v57 = vld [vmem:[%s1 + $0x20] sm:$0xf]
    %v58 = vld [vmem:[%s1 + $0x24] sm:$0xf]
    %v59 = vld [vmem:[%s1 + $0x28] sm:$0xf]
    %v60 = vld [vmem:[%s1 + $0x2c] sm:$0xf]
    %v61 = vld [vmem:[%s1 + $0x30] sm:$0xf]
    %v62 = vld [vmem:[%s1 + $0x34] sm:$0xf]
    %v63 = vld [vmem:[%s1 + $0x38] sm:$0xf]
    %v64 = vld [vmem:[%s1 + $0x3c] sm:$0xf]
    %v65 = vld [vmem:[%s2] sm:$0x1]
    %v67 = vlaneseq
    %v68 = vshrl.u32 %v67, 7
    %v69 = vsub.s32 0, %v68
    %v70 = vrot.slane %v65, %v69
    %v88 = vunpack.c.l.b16 %v49
    %v89 = vunpack.c.l.b16 %v50
    %v90 = vunpack.c.l.b16 %v51
    %v91 = vunpack.c.l.b16 %v52
    %v92 = vunpack.c.l.b16 %v53
    %v93 = vunpack.c.l.b16 %v54
    %v94 = vunpack.c.l.b16 %v55
    %v95 = vunpack.c.l.b16 %v56
    %v96 = vunpack.c.l.b16 %v57
    %v97 = vunpack.c.l.b16 %v58
    %v98 = vunpack.c.l.b16 %v59
    %v99 = vunpack.c.l.b16 %v60
    %v100 = vunpack.c.l.b16 %v61
    %v101 = vunpack.c.l.b16 %v62
    %v102 = vunpack.c.l.b16 %v63
    %v103 = vunpack.c.l.b16 %v64
    %v104 = vpack.c.b16 %v89, %v88
    %v105 = vpack.c.b16 %v91, %v90
    %v106 = vpack.c.b16 %v93, %v92
    %v107 = vpack.c.b16 %v95, %v94
    %v108 = vpack.c.b16 %v97, %v96
    %v109 = vpack.c.b16 %v99, %v98
    %v110 = vpack.c.b16 %v101, %v100
    %v111 = vpack.c.b16 %v103, %v102
    %120 = vmatprep.subr.bf16.mxu0 0
    %121 = vmatpush1.bf16.msra.mxu0 %v104
    %122 = vmatprep.subr.bf16.mxu0 0
    %123 = vmatpush1.bf16.msra.mxu0 %v105
    %124 = vmatprep.subr.bf16.mxu0 0
    %125 = vmatpush1.bf16.msra.mxu0 %v106
    %126 = vmatprep.subr.bf16.mxu0 0
    %127 = vmatpush1.bf16.msra.mxu0 %v107
    %128 = vmatprep.subr.bf16.mxu0 0
    %129 = vmatpush1.bf16.msra.mxu0 %v108
    %130 = vmatprep.subr.bf16.mxu0 0
    %131 = vmatpush1.bf16.msra.mxu0 %v109
    %132 = vmatprep.subr.bf16.mxu0 0
    %133 = vmatpush1.bf16.msra.mxu0 %v110
    %134 = vmatprep.subr.bf16.mxu0 0
    %135 = vmatpush1.bf16.msra.mxu0 %v111
    %136 = vmatprep.subr.bf16.mxu0 0
    %137 = vmatpush1.bf16.msra.mxu0 0
    %138 = vmatprep.subr.bf16.mxu0 0
    %139 = vmatpush1.bf16.msra.mxu0 0
    %140 = vmatprep.subr.bf16.mxu0 0
    %141 = vmatpush1.bf16.msra.mxu0 0
    %142 = vmatprep.subr.bf16.mxu0 0
    %143 = vmatpush1.bf16.msra.mxu0 0
    %144 = vmatprep.subr.bf16.mxu0 0
    %145 = vmatpush1.bf16.msra.mxu0 0
    %146 = vmatprep.subr.bf16.mxu0 0
    %147 = vmatpush1.bf16.msra.mxu0 0
    %148 = vmatprep.subr.bf16.mxu0 0
    %149 = vmatpush1.bf16.msra.mxu0 0
    %150 = vmatprep.subr.bf16.mxu0 0
    %151 = vmatpush1.bf16.msra.mxu0 0
    %152 = vmatprep.mubr.bf16.mxu0 0
    %153 = vmatmul.mubr.bf16.gmra.mrb[0].mxu0 %v45
    %v154 = vpop.f32.mrb[0].mxu0
    %v155 = vadd.f32 %v70, %v154
    %v156 = vpop.f32.mrb[0].mxu0
    %v157 = vpop.f32.mrb[0].mxu0
    %v158 = vadd.f32 %v70, %v157
    %v159 = vpop.f32.mrb[0].mxu0
    %160 = vmatprep.mubr.bf16.mxu0 0
    %161 = vmatmul.mubr.bf16.gmra.mrb[0].mxu0 %v46
    %v162 = vpop.f32.mrb[0].mxu0
    %v163 = vadd.f32 %v70, %v162
    %v164 = vpop.f32.mrb[0].mxu0
    %v165 = vpop.f32.mrb[0].mxu0
    %v166 = vadd.f32 %v70, %v165
    %v167 = vpop.f32.mrb[0].mxu0
    %168 = vmatprep.mubr.bf16.mxu0 0
    %169 = vmatmul.mubr.bf16.gmra.mrb[0].mxu0 %v47
    %v170 = vpop.f32.mrb[0].mxu0
    %v171 = vadd.f32 %v70, %v170
    %v172 = vpop.f32.mrb[0].mxu0
    %v173 = vpop.f32.mrb[0].mxu0
    %v174 = vadd.f32 %v70, %v173
    %v175 = vpop.f32.mrb[0].mxu0
    %176 = vmatprep.mubr.bf16.mxu0 0
    %177 = vmatmul.mubr.bf16.gmra.mrb[0].mxu0 %v48
    %v178 = vpop.f32.mrb[0].mxu0
    %v179 = vadd.f32 %v70, %v178
    %v180 = vpop.f32.mrb[0].mxu0
    %v181 = vpop.f32.mrb[0].mxu0
    %v182 = vpop.f32.mrb[0].mxu0
    %183 = vdwg.mxu0
    %v184 = vmax.f32 %v155, 0.0
    %v185 = vmax.f32 %v158, 0.0
    %v186 = vmax.f32 %v163, 0.0
    %v187 = vmax.f32 %v166, 0.0
    %v188 = vmax.f32 %v171, 0.0
    %v189 = vmax.f32 %v174, 0.0
    %v190 = vmax.f32 %v179, 0.0
    %191 = vst [vmem:[#allocation5] sm:$0xff] %v184
    %192 = vst [vmem:[#allocation5 + $0x8] sm:$0xff] %v185
    %193 = vst [vmem:[#allocation5 + $0x10] sm:$0xff] %v186
    %194 = vst [vmem:[#allocation5 + $0x18] sm:$0xff] %v187
    %195 = vst [vmem:[#allocation5 + $0x20] sm:$0xff] %v188
    %196 = vst [vmem:[#allocation5 + $0x28] sm:$0xff] %v189
    %197 = vst [vmem:[#allocation5 + $0x30] sm:$0xff] %v190
    %v198 = vpack.c.bf16 %v185, %v184
    %v199 = vpack.c.bf16 %v187, %v186
    %v200 = vpack.c.bf16 %v189, %v188
    %v201 = vpack.c.bf16 %v190, %v190
    %v202 = vld [vmem:[%s3] sm:$0xf]
    %v203 = vld [vmem:[%s3 + $0x4] sm:$0xf]
    %v204 = vld [vmem:[%s3 + $0x8] sm:$0xf]
    %v205 = vld [vmem:[%s3 + $0xc] sm:$0xf]
    %v206 = vld [vmem:[%s3 + $0x10] sm:$0xf]
    %v207 = vld [vmem:[%s3 + $0x14] sm:$0xf]
    %v208 = vld [vmem:[%s3 + $0x18] sm:$0xf]
    %v209 = vld [vmem:[%s3 + $0x1c] sm:$0xf]
    %v210 = vld [vmem:[%s3 + $0x20] sm:$0xf]
    %v211 = vld [vmem:[%s3 + $0x24] sm:$0xf]
    %v212 = vld [vmem:[%s3 + $0x28] sm:$0xf]
    %v213 = vld [vmem:[%s3 + $0x2c] sm:$0xf]
    %v214 = vld [vmem:[%s3 + $0x30] sm:$0xf]
    %v215 = vld [vmem:[%s3 + $0x34] sm:$0xf]
    %v216 = vld [vmem:[%s3 + $0x38] sm:$0xf]
    %v217 = vld [vmem:[%s3 + $0x3c] sm:$0xf]
    %v218 = vld [vmem:[%s4] sm:$0x1]
    %v220 = vlaneseq
    %v221 = vshrl.u32 %v220, 7
    %v222 = vsub.s32 0, %v221
    %v223 = vrot.slane %v218, %v222
    %v241 = vunpack.c.l.b16 %v202
    %v242 = vunpack.c.l.b16 %v203
    %v243 = vunpack.c.l.b16 %v204
    %v244 = vunpack.c.l.b16 %v205
    %v245 = vunpack.c.l.b16 %v206
    %v246 = vunpack.c.l.b16 %v207
    %v247 = vunpack.c.l.b16 %v208
    %v248 = vunpack.c.l.b16 %v209
    %v249 = vunpack.c.l.b16 %v210
    %v250 = vunpack.c.l.b16 %v211
    %v251 = vunpack.c.l.b16 %v212
    %v252 = vunpack.c.l.b16 %v213
    %v253 = vunpack.c.l.b16 %v214
    %v254 = vunpack.c.l.b16 %v215
    %v255 = vunpack.c.l.b16 %v216
    %v256 = vunpack.c.l.b16 %v217
    %v257 = vpack.c.b16 %v242, %v241
    %v258 = vpack.c.b16 %v244, %v243
    %v259 = vpack.c.b16 %v246, %v245
    %v260 = vpack.c.b16 %v248, %v247
    %v261 = vpack.c.b16 %v250, %v249
    %v262 = vpack.c.b16 %v252, %v251
    %v263 = vpack.c.b16 %v254, %v253
    %v264 = vpack.c.b16 %v256, %v255
    %273 = vmatprep.subr.bf16.mxu0 0
    %274 = vmatpush1.bf16.msra.mxu0 %v257
    %275 = vmatprep.subr.bf16.mxu0 0
    %276 = vmatpush1.bf16.msra.mxu0 %v258
    %277 = vmatprep.subr.bf16.mxu0 0
    %278 = vmatpush1.bf16.msra.mxu0 %v259
    %279 = vmatprep.subr.bf16.mxu0 0
    %280 = vmatpush1.bf16.msra.mxu0 %v260
    %281 = vmatprep.subr.bf16.mxu0 0
    %282 = vmatpush1.bf16.msra.mxu0 %v261
    %283 = vmatprep.subr.bf16.mxu0 0
    %284 = vmatpush1.bf16.msra.mxu0 %v262
    %285 = vmatprep.subr.bf16.mxu0 0
    %286 = vmatpush1.bf16.msra.mxu0 %v263
    %287 = vmatprep.subr.bf16.mxu0 0
    %288 = vmatpush1.bf16.msra.mxu0 %v264
    %289 = vmatprep.subr.bf16.mxu0 0
    %290 = vmatpush1.bf16.msra.mxu0 0
    %291 = vmatprep.subr.bf16.mxu0 0
    %292 = vmatpush1.bf16.msra.mxu0 0
    %293 = vmatprep.subr.bf16.mxu0 0
    %294 = vmatpush1.bf16.msra.mxu0 0
    %295 = vmatprep.subr.bf16.mxu0 0
    %296 = vmatpush1.bf16.msra.mxu0 0
    %297 = vmatprep.subr.bf16.mxu0 0
    %298 = vmatpush1.bf16.msra.mxu0 0
    %299 = vmatprep.subr.bf16.mxu0 0
    %300 = vmatpush1.bf16.msra.mxu0 0
    %301 = vmatprep.subr.bf16.mxu0 0
    %302 = vmatpush1.bf16.msra.mxu0 0
    %303 = vmatprep.subr.bf16.mxu0 0
    %304 = vmatpush1.bf16.msra.mxu0 0
    %305 = vmatprep.mubr.bf16.mxu0 0
    %306 = vmatmul.mubr.bf16.gmra.mrb[0].mxu0 %v198
    %v307 = vpop.f32.mrb[0].mxu0
    %v308 = vadd.f32 %v223, %v307
    %v309 = vpop.f32.mrb[0].mxu0
    %v310 = vpop.f32.mrb[0].mxu0
    %v311 = vadd.f32 %v223, %v310
    %v312 = vpop.f32.mrb[0].mxu0
    %313 = vmatprep.mubr.bf16.mxu0 0
    %314 = vmatmul.mubr.bf16.gmra.mrb[0].mxu0 %v199
    %v315 = vpop.f32.mrb[0].mxu0
    %v316 = vadd.f32 %v223, %v315
    %v317 = vpop.f32.mrb[0].mxu0
    %v318 = vpop.f32.mrb[0].mxu0
    %v319 = vadd.f32 %v223, %v318
    %v320 = vpop.f32.mrb[0].mxu0
    %321 = vmatprep.mubr.bf16.mxu0 0
    %322 = vmatmul.mubr.bf16.gmra.mrb[0].mxu0 %v200
    %v323 = vpop.f32.mrb[0].mxu0
    %v324 = vadd.f32 %v223, %v323
    %v325 = vpop.f32.mrb[0].mxu0
    %v326 = vpop.f32.mrb[0].mxu0
    %v327 = vadd.f32 %v223, %v326
    %v328 = vpop.f32.mrb[0].mxu0
    %329 = vmatprep.mubr.bf16.mxu0 0
    %330 = vmatmul.mubr.bf16.gmra.mrb[0].mxu0 %v201
    %v331 = vpop.f32.mrb[0].mxu0
    %v332 = vadd.f32 %v223, %v331
    %v333 = vpop.f32.mrb[0].mxu0
    %v334 = vpop.f32.mrb[0].mxu0
    %v335 = vpop.f32.mrb[0].mxu0
    %336 = vdwg.mxu0
    %vm337 = vcmask 195584
    %338 = vst.msk [vmem:[%s5] sm:$0xff] %vm337, %v308
    %339 = vst.msk [vmem:[%s5 + $0x8] sm:$0xff] %vm337, %v311
    %340 = vst.msk [vmem:[%s5 + $0x10] sm:$0xff] %vm337, %v316
    %341 = vst.msk [vmem:[%s5 + $0x18] sm:$0xff] %vm337, %v319
    %342 = vst.msk [vmem:[%s5 + $0x20] sm:$0xff] %vm337, %v324
    %343 = vst.msk [vmem:[%s5 + $0x28] sm:$0xff] %vm337, %v327
    %344 = vst.msk [vmem:[%s5 + $0x30] sm:$0xff] %vm337, %v332
    // Predicated region
    $region26: #{tpu_custom_call.1} parent=1 // pred_check
      _
    $region27: #{tpu_custom_call.1} parent=1 // pred_check_branch
      %346 = sbr.rel (0) target = $region29
    $region28: #{tpu_custom_call.1} parent=1 // pred_region
      _
    $region29: #{tpu_custom_call.1} parent=1 // pred_fallthru
      _
    // Predicated region
    $region30: #{tpu_custom_call.1} parent=1 // pred_check
      _
    $region31: #{tpu_custom_call.1} parent=1 // pred_check_branch
      %348 = sbr.rel (0) target = $region33
    $region32: #{tpu_custom_call.1} parent=1 // pred_region
      %s350 = ssub.s32 896, 896
      %351 = vsyncadd [#allocation4], %s350
      %s352 = sshll.u32 [#allocation5], 4
      %s353 = int_to_ptr.vmem [resolvable:$true] %s352
      %358 = dma.vmem_to_hbm [thread:$0]  %s353, 896, %s6, [#allocation4], 128, 128, 8
    $region33: #{tpu_custom_call.1} parent=1 // pred_fallthru
      _
    // Predicated region
    $region34: #{tpu_custom_call.1} parent=1 // pred_check
      _
    $region35: #{tpu_custom_call.1} parent=1 // pred_check_branch
      %360 = sbr.rel (0) target = $region37
    $region36: #{tpu_custom_call.1} parent=1 // pred_region
      _
    $region37: #{tpu_custom_call.1} parent=1 // pred_fallthru
      _
    // Predicated region
    $region38: #{tpu_custom_call.1} parent=1 // pred_check
      _
    $region39: #{tpu_custom_call.1} parent=1 // pred_check_branch
      %362 = sbr.rel (0) target = $region41
    $region40: #{tpu_custom_call.1} parent=1 // pred_region
      %363 = dma.done [#allocation4], 896
    $region41: #{tpu_custom_call.1} parent=1 // pred_fallthru
      _
    %364 = vsyncpa [#allocation3], 1
    %365 = vsyncpa [#allocation4], 1

</llo_original>
